<compile_context>
chip_gen: v7x
topology: tpu7x:2x2x1
jax: 0.10.0
libtpu: 0.0.40
codegen_flags: <defaults>
</compile_context>

<pallas_src>
import functools

import jax
import jax.numpy as jnp
from jax import lax
from jax.experimental import pallas as pl
from jax.experimental.pallas import tpu as pltpu

BN_EPS = 1e-5
LANE = 128
SUBLANE = 8
NEG_BIG = -1e30  # pad-lane bias (f32 path): exp(NEG_BIG - max) underflows to 0


def _round_up(n, m):
    return (n + m - 1) // m * m


def _mlp_kernel(x_ref, w1_ref, b1_ref, w2_ref, b2_ref, w3_ref, b3_ref,
                w4_ref, b4_ref, o_ref):
    """(h @ W + b, ReLU) x3, final Linear, row softmax.  BN already folded.

    Matmul inputs are bf16; accumulation, bias add, ReLU and softmax are f32.
    """
    h = x_ref[...]  # bf16
    h = jnp.dot(h, w1_ref[...], preferred_element_type=jnp.float32) + b1_ref[...]
    h = jnp.maximum(h, 0.0)
    h = jnp.dot(h.astype(jnp.bfloat16), w2_ref[...],
                preferred_element_type=jnp.float32) + b2_ref[...]
    h = jnp.maximum(h, 0.0)
    h = jnp.dot(h.astype(jnp.bfloat16), w3_ref[...],
                preferred_element_type=jnp.float32) + b3_ref[...]
    h = jnp.maximum(h, 0.0)

    # Final Linear; out dim is lane-padded to a multiple of 128.  Padded lanes
    # have zero weights and a -1e30 bias, so they contribute exactly 0 to the
    # softmax (f32 exp underflows to 0, no NaN).
    logits = jnp.dot(h.astype(jnp.bfloat16), w4_ref[...],
                     preferred_element_type=jnp.float32) + b4_ref[...]

    m = jnp.max(logits, axis=1, keepdims=True)
    e = jnp.exp(logits - m)
    denom = jnp.sum(e, axis=1, keepdims=True)
    # Exact divide: rows sum to 1 to f32 rounding (approx reciprocal was the
    # source of the failed sum-to-1 check).
    o_ref[...] = (e / denom).astype(o_ref.dtype)


def _fold_bn(w, b, gamma, beta, rm, rv):
    """Fold eval-mode BatchNorm1d into the preceding Linear (W:[in,out], vecs:[1,out])."""
    scale = gamma * lax.rsqrt(rv + BN_EPS)          # [1, out]
    return w * scale, (b - rm) * scale + beta


def prepare_params(params):
    """One-time host-side folding / padding / casting (hoisted out of the forward)."""
    n_classes = int(params["w4"].shape[1])

    w1, b1 = _fold_bn(params["w1"], params["b1"], params["g1"], params["be1"],
                      params["rm1"], params["rv1"])
    w2, b2 = _fold_bn(params["w2"], params["b2"], params["g2"], params["be2"],
                      params["rm2"], params["rv2"])
    w3, b3 = _fold_bn(params["w3"], params["b3"], params["g3"], params["be3"],
                      params["rm3"], params["rv3"])

    out_pad = _round_up(n_classes, LANE)
    pad_c = out_pad - n_classes
    w4 = jnp.pad(params["w4"], ((0, 0), (0, pad_c)))                  # zero cols
    b4 = jnp.concatenate(
        [params["b4"], jnp.full((1, pad_c), NEG_BIG, jnp.float32)], axis=1)

    folded = dict(
        w1=w1.astype(jnp.bfloat16), b1=b1,       # weights bf16 (MXU), biases f32
        w2=w2.astype(jnp.bfloat16), b2=b2,
        w3=w3.astype(jnp.bfloat16), b3=b3,
        w4=w4.astype(jnp.bfloat16), b4=b4,
    )
    return folded, n_classes


@functools.partial(jax.jit, static_argnames=("n_classes", "tile_b"))
def maml_module1_forward(x, folded, *, n_classes, tile_b=512):
    """x: [B, input_len] float32. folded: dict from prepare_params. Returns [B, n_classes] f32."""
    B, in_len = x.shape
    out_pad = folded["w4"].shape[1]

    # Batch tile: large (default 512 rows) for HBM-roofline efficiency, but
    # capped so the parallel grid has >= 2 steps whenever B > 8 (keeps both
    # v7x TensorCores busy; weights are tiny so duplicating them is free).
    tile = min(tile_b, max(SUBLANE, _round_up(-(-B // 2), SUBLANE)))
    b_pad = _round_up(B, tile)
    x_p = jnp.pad(x, ((0, b_pad - B), (0, 0))) if b_pad != B else x
    x_p = x_p.astype(jnp.bfloat16)   # halves input DMA bytes; MXU input is bf16

    const2 = lambda i: (0, 0)        # weights/biases: VMEM-resident across grid steps
    grid = (b_pad // tile,)

    out = pl.pallas_call(
        _mlp_kernel,
        out_shape=jax.ShapeDtypeStruct((b_pad, out_pad), jnp.float32),
        grid_spec=pltpu.PrefetchScalarGridSpec(
            num_scalar_prefetch=0,
            grid=grid,
            in_specs=[
                pl.BlockSpec((tile, in_len), lambda i: (i, 0)),
                pl.BlockSpec(folded["w1"].shape, const2),
                pl.BlockSpec(folded["b1"].shape, const2),
                pl.BlockSpec(folded["w2"].shape, const2),
                pl.BlockSpec(folded["b2"].shape, const2),
                pl.BlockSpec(folded["w3"].shape, const2),
                pl.BlockSpec(folded["b3"].shape, const2),
                pl.BlockSpec(folded["w4"].shape, const2),
                pl.BlockSpec(folded["b4"].shape, const2),
            ],
            out_specs=pl.BlockSpec((tile, out_pad), lambda i: (i, 0)),
        ),
        compiler_params=pltpu.CompilerParams(
            dimension_semantics=("parallel",),
            vmem_limit_bytes=32 * 1024 * 1024),   # headroom on v5e's 16 MiB default
    )(x_p, folded["w1"], folded["b1"], folded["w2"], folded["b2"],
      folded["w3"], folded["b3"], folded["w4"], folded["b4"])

    return out[:B, :n_classes]


def init_params(key, input_len, n_classes):
    """Deterministic parameter init (PyTorch-like uniform(-1/sqrt(fan_in), .))."""
    dims = [(input_len, 256), (256, 128), (128, 64), (64, n_classes)]
    params = {}
    keys = jax.random.split(key, 16)
    ki = 0
    for idx, (fan_in, fan_out) in enumerate(dims, start=1):
        bound = 1.0 / jnp.sqrt(jnp.asarray(fan_in, jnp.float32))
        params[f"w{idx}"] = jax.random.uniform(
            keys[ki], (fan_in, fan_out), jnp.float32, -bound, bound); ki += 1
        params[f"b{idx}"] = jax.random.uniform(
            keys[ki], (1, fan_out), jnp.float32, -bound, bound); ki += 1
        if idx <= 3:  # BN after fc1/fc2/fc3 only
            params[f"g{idx}"] = 1.0 + 0.1 * jax.random.normal(
                keys[ki], (1, fan_out), jnp.float32); ki += 1
            params[f"be{idx}"] = 0.1 * jax.random.normal(
                keys[ki], (1, fan_out), jnp.float32); ki += 1
            # running stats (eval-mode BN); deterministic, non-trivial
            params[f"rm{idx}"] = 0.05 * jnp.sin(
                jnp.arange(fan_out, dtype=jnp.float32)).reshape(1, fan_out)
            params[f"rv{idx}"] = 1.0 + 0.05 * jnp.cos(
                jnp.arange(fan_out, dtype=jnp.float32)).reshape(1, fan_out)
    return params


def _reference_forward(x, p):
    """Plain-JAX f32 reference (unfolded BN) for checking kernel + folding."""
    h = x
    for i in (1, 2, 3):
        h = h @ p[f"w{i}"] + p[f"b{i}"]
        h = (h - p[f"rm{i}"]) / jnp.sqrt(p[f"rv{i}"] + BN_EPS) * p[f"g{i}"] + p[f"be{i}"]
        h = jnp.maximum(h, 0.0)
    logits = h @ p["w4"] + p["b4"]
    return jax.nn.softmax(logits, axis=1)


if __name__ == "__main__":
    INPUT_LEN = 32
    N_CLASSES = 10
    BATCH = 8

    key = jax.random.PRNGKey(0)
    k_x, k_p, k_x2 = jax.random.split(key, 3)
    params = init_params(k_p, INPUT_LEN, N_CLASSES)
    folded, n_classes = prepare_params(params)   # one-time fold / pad / bf16 cast

    # small batch (single grid step, batch padded to a sublane multiple)
    x = jax.random.normal(k_x, (BATCH, INPUT_LEN), jnp.float32)
    out = jax.block_until_ready(maml_module1_forward(x, folded, n_classes=n_classes))
    ref = _reference_forward(x, params)
    assert out.shape == (BATCH, N_CLASSES)
    # bf16 matmul inputs (f32 accumulation) -> loosen allclose vs f32 reference
    assert jnp.allclose(out, ref, atol=2e-2, rtol=2e-2), "mismatch vs reference (B=8)"
    assert jnp.allclose(jnp.sum(out, axis=1), 1.0, atol=1e-3), "softmax rows must sum to 1"

    # larger batch exercising the multi-step parallel grid (weights stay resident)
    B2 = 256
    x2 = jax.random.normal(k_x2, (B2, INPUT_LEN), jnp.float32)
    out2 = jax.block_until_ready(maml_module1_forward(x2, folded, n_classes=n_classes))
    ref2 = _reference_forward(x2, params)
    assert out2.shape == (B2, N_CLASSES)
    assert jnp.allclose(out2, ref2, atol=2e-2, rtol=2e-2), "mismatch vs reference (B=256)"
    assert jnp.allclose(jnp.sum(out2, axis=1), 1.0, atol=1e-3), "softmax rows must sum to 1 (B=256)"

    print("KERNEL_OK")
</pallas_src>

<mosaic_0001>
module attributes {stable_mosaic.version = 11 : i64} {
  func.func @_mlp_kernel(%arg0: i32, %arg1: memref<8x32xbf16, #tpu.memory_space<vmem>>, %arg2: memref<32x256xbf16, #tpu.memory_space<vmem>>, %arg3: memref<1x256xf32, #tpu.memory_space<vmem>>, %arg4: memref<256x128xbf16, #tpu.memory_space<vmem>>, %arg5: memref<1x128xf32, #tpu.memory_space<vmem>>, %arg6: memref<128x64xbf16, #tpu.memory_space<vmem>>, %arg7: memref<1x64xf32, #tpu.memory_space<vmem>>, %arg8: memref<64x128xbf16, #tpu.memory_space<vmem>>, %arg9: memref<1x128xf32, #tpu.memory_space<vmem>>, %arg10: memref<8x128xf32, #tpu.memory_space<vmem>>) attributes {dimension_semantics = [#tpu.dimension_semantics<parallel>], iteration_bounds = array<i64: 1>, scalar_prefetch = 0 : i64, scratch_operands = 0 : i64, tpu.core_type = #tpu.core_type<tc>, window_params = [{transform_indices = @transform_0, window_bounds = array<i64: 8, 32>}, {pipeline_mode = #tpu.pipeline_mode<synchronous>, transform_indices = @transform_1, window_bounds = array<i64: 32, 256>}, {pipeline_mode = #tpu.pipeline_mode<synchronous>, transform_indices = @transform_2, window_bounds = array<i64: 1, 256>}, {pipeline_mode = #tpu.pipeline_mode<synchronous>, transform_indices = @transform_3, window_bounds = array<i64: 256, 128>}, {pipeline_mode = #tpu.pipeline_mode<synchronous>, transform_indices = @transform_4, window_bounds = array<i64: 1, 128>}, {pipeline_mode = #tpu.pipeline_mode<synchronous>, transform_indices = @transform_5, window_bounds = array<i64: 128, 64>}, {pipeline_mode = #tpu.pipeline_mode<synchronous>, transform_indices = @transform_6, window_bounds = array<i64: 1, 64>}, {pipeline_mode = #tpu.pipeline_mode<synchronous>, transform_indices = @transform_7, window_bounds = array<i64: 64, 128>}, {pipeline_mode = #tpu.pipeline_mode<synchronous>, transform_indices = @transform_8, window_bounds = array<i64: 1, 128>}, {transform_indices = @transform_9, window_bounds = array<i64: 8, 128>}]} {
    %c0 = arith.constant 0 : index
    %c0_0 = arith.constant 0 : index
    %0 = vector.load %arg1[%c0, %c0_0] : memref<8x32xbf16, #tpu.memory_space<vmem>>, vector<8x32xbf16>
    %c0_1 = arith.constant 0 : index
    %c0_2 = arith.constant 0 : index
    %1 = vector.load %arg2[%c0_1, %c0_2] : memref<32x256xbf16, #tpu.memory_space<vmem>>, vector<32x256xbf16>
    %cst = arith.constant dense<0.000000e+00> : vector<8x256xf32>
    %2 = tpu.matmul %0, %1, %cst {dimension_numbers = #tpu.dot_dimension_numbers<[1], [0], [0], [1], [0, 0, 1, 1], [], []>} : vector<8x32xbf16>, vector<32x256xbf16>, vector<8x256xf32> -> vector<8x256xf32>
    %c0_3 = arith.constant 0 : index
    %c0_4 = arith.constant 0 : index
    %3 = vector.load %arg3[%c0_3, %c0_4] : memref<1x256xf32, #tpu.memory_space<vmem>>, vector<1x256xf32>
    %4 = vector.broadcast %3 : vector<1x256xf32> to vector<8x256xf32>
    %5 = arith.addf %2, %4 : vector<8x256xf32>
    %cst_5 = arith.constant 0.000000e+00 : f32
    %6 = vector.broadcast %cst_5 : f32 to vector<8x256xf32>
    %7 = arith.maximumf %5, %6 : vector<8x256xf32>
    %8 = arith.truncf %7 : vector<8x256xf32> to vector<8x256xbf16>
    %c0_6 = arith.constant 0 : index
    %c0_7 = arith.constant 0 : index
    %9 = vector.load %arg4[%c0_6, %c0_7] : memref<256x128xbf16, #tpu.memory_space<vmem>>, vector<256x128xbf16>
    %cst_8 = arith.constant dense<0.000000e+00> : vector<8x128xf32>
    %10 = tpu.matmul %8, %9, %cst_8 {dimension_numbers = #tpu.dot_dimension_numbers<[1], [0], [0], [1], [0, 0, 1, 1], [], []>} : vector<8x256xbf16>, vector<256x128xbf16>, vector<8x128xf32> -> vector<8x128xf32>
    %c0_9 = arith.constant 0 : index
    %c0_10 = arith.constant 0 : index
    %11 = vector.load %arg5[%c0_9, %c0_10] : memref<1x128xf32, #tpu.memory_space<vmem>>, vector<1x128xf32>
    %12 = vector.broadcast %11 : vector<1x128xf32> to vector<8x128xf32>
    %13 = arith.addf %10, %12 : vector<8x128xf32>
    %cst_11 = arith.constant 0.000000e+00 : f32
    %14 = vector.broadcast %cst_11 : f32 to vector<8x128xf32>
    %15 = arith.maximumf %13, %14 : vector<8x128xf32>
    %16 = arith.truncf %15 : vector<8x128xf32> to vector<8x128xbf16>
    %c0_12 = arith.constant 0 : index
    %c0_13 = arith.constant 0 : index
    %17 = vector.load %arg6[%c0_12, %c0_13] : memref<128x64xbf16, #tpu.memory_space<vmem>>, vector<128x64xbf16>
    %cst_14 = arith.constant dense<0.000000e+00> : vector<8x64xf32>
    %18 = tpu.matmul %16, %17, %cst_14 {dimension_numbers = #tpu.dot_dimension_numbers<[1], [0], [0], [1], [0, 0, 1, 1], [], []>} : vector<8x128xbf16>, vector<128x64xbf16>, vector<8x64xf32> -> vector<8x64xf32>
    %c0_15 = arith.constant 0 : index
    %c0_16 = arith.constant 0 : index
    %19 = vector.load %arg7[%c0_15, %c0_16] : memref<1x64xf32, #tpu.memory_space<vmem>>, vector<1x64xf32>
    %20 = vector.broadcast %19 : vector<1x64xf32> to vector<8x64xf32>
    %21 = arith.addf %18, %20 : vector<8x64xf32>
    %cst_17 = arith.constant 0.000000e+00 : f32
    %22 = vector.broadcast %cst_17 : f32 to vector<8x64xf32>
    %23 = arith.maximumf %21, %22 : vector<8x64xf32>
    %24 = arith.truncf %23 : vector<8x64xf32> to vector<8x64xbf16>
    %c0_18 = arith.constant 0 : index
    %c0_19 = arith.constant 0 : index
    %25 = vector.load %arg8[%c0_18, %c0_19] : memref<64x128xbf16, #tpu.memory_space<vmem>>, vector<64x128xbf16>
    %cst_20 = arith.constant dense<0.000000e+00> : vector<8x128xf32>
    %26 = tpu.matmul %24, %25, %cst_20 {dimension_numbers = #tpu.dot_dimension_numbers<[1], [0], [0], [1], [0, 0, 1, 1], [], []>} : vector<8x64xbf16>, vector<64x128xbf16>, vector<8x128xf32> -> vector<8x128xf32>
    %c0_21 = arith.constant 0 : index
    %c0_22 = arith.constant 0 : index
    %27 = vector.load %arg9[%c0_21, %c0_22] : memref<1x128xf32, #tpu.memory_space<vmem>>, vector<1x128xf32>
    %28 = vector.broadcast %27 : vector<1x128xf32> to vector<8x128xf32>
    %29 = arith.addf %26, %28 : vector<8x128xf32>
    %cst_23 = arith.constant dense<0xFF800000> : vector<8xf32>
    %30 = vector.multi_reduction <maximumf>, %29, %cst_23 [1] : vector<8x128xf32> to vector<8xf32>
    %31 = vector.shape_cast %30 : vector<8xf32> to vector<8x1xf32>
    %32 = vector.broadcast %31 : vector<8x1xf32> to vector<8x128xf32>
    %33 = arith.subf %29, %32 : vector<8x128xf32>
    %34 = math.exp %33 : vector<8x128xf32>
    %cst_24 = arith.constant dense<0.000000e+00> : vector<8xf32>
    %35 = vector.multi_reduction <add>, %34, %cst_24 [1] : vector<8x128xf32> to vector<8xf32>
    %36 = vector.shape_cast %35 : vector<8xf32> to vector<8x1xf32>
    %37 = vector.broadcast %36 : vector<8x1xf32> to vector<8x128xf32>
    %38 = arith.divf %34, %37 : vector<8x128xf32>
    %c0_25 = arith.constant 0 : index
    %c0_26 = arith.constant 0 : index
    %39 = vector.load %arg10[%c0_25, %c0_26] : memref<8x128xf32, #tpu.memory_space<vmem>>, vector<8x128xf32>
    tpu.vector_store %arg10[%c0_25, %c0_26], %38 {strides = array<i32>} : memref<8x128xf32, #tpu.memory_space<vmem>>, vector<8x128xf32>,
    return
  }
  func.func @transform_0(%arg0: i32) -> (i32, i32) {
    %c0_i32 = arith.constant 0 : i32
    %c0_i32_0 = arith.constant 0 : i32
    return %arg0, %c0_i32 : i32, i32
  }
  func.func @transform_1(%arg0: i32) -> (i32, i32) {
    %c0_i32 = arith.constant 0 : i32
    %c0_i32_0 = arith.constant 0 : i32
    %c0_i32_1 = arith.constant 0 : i32
    return %c0_i32, %c0_i32_0 : i32, i32
  }
  func.func @transform_2(%arg0: i32) -> (i32, i32) {
    %c0_i32 = arith.constant 0 : i32
    %c0_i32_0 = arith.constant 0 : i32
    %c0_i32_1 = arith.constant 0 : i32
    return %c0_i32, %c0_i32_0 : i32, i32
  }
  func.func @transform_3(%arg0: i32) -> (i32, i32) {
    %c0_i32 = arith.constant 0 : i32
    %c0_i32_0 = arith.constant 0 : i32
    %c0_i32_1 = arith.constant 0 : i32
    return %c0_i32, %c0_i32_0 : i32, i32
  }
  func.func @transform_4(%arg0: i32) -> (i32, i32) {
    %c0_i32 = arith.constant 0 : i32
    %c0_i32_0 = arith.constant 0 : i32
    %c0_i32_1 = arith.constant 0 : i32
    return %c0_i32, %c0_i32_0 : i32, i32
  }
  func.func @transform_5(%arg0: i32) -> (i32, i32) {
    %c0_i32 = arith.constant 0 : i32
    %c0_i32_0 = arith.constant 0 : i32
    %c0_i32_1 = arith.constant 0 : i32
    return %c0_i32, %c0_i32_0 : i32, i32
  }
  func.func @transform_6(%arg0: i32) -> (i32, i32) {
    %c0_i32 = arith.constant 0 : i32
    %c0_i32_0 = arith.constant 0 : i32
    %c0_i32_1 = arith.constant 0 : i32
    return %c0_i32, %c0_i32_0 : i32, i32
  }
  func.func @transform_7(%arg0: i32) -> (i32, i32) {
    %c0_i32 = arith.constant 0 : i32
    %c0_i32_0 = arith.constant 0 : i32
    %c0_i32_1 = arith.constant 0 : i32
    return %c0_i32, %c0_i32_0 : i32, i32
  }
  func.func @transform_8(%arg0: i32) -> (i32, i32) {
    %c0_i32 = arith.constant 0 : i32
    %c0_i32_0 = arith.constant 0 : i32
    %c0_i32_1 = arith.constant 0 : i32
    return %c0_i32, %c0_i32_0 : i32, i32
  }
  func.func @transform_9(%arg0: i32) -> (i32, i32) {
    %c0_i32 = arith.constant 0 : i32
    %c0_i32_0 = arith.constant 0 : i32
    return %arg0, %c0_i32 : i32, i32
  }
}

</mosaic_0001>

<llo_original>
// kernel: maml_module1_forward.1
$region0: #{maml_module1_forward.1}
  #allocation0 [shape = 'u32[]', space=smem, size = 0x4, offset = 0x4, fixed_abs, tag = 'smem constant byte address 0x4 - core index']
  #allocation1 [shape = 'u32[144,128]{1,0:T(1,128)}', space=vmem, size = 0x12000, scoped, tag = 'internal scratch']
  %s0 = inlined_call_operand.vmem [shape: bf16[8,32], index: 0, kind: input, shape index: {}]
  %s1 = inlined_call_operand.hbm [shape: bf16[32,256], index: 1, kind: input, shape index: {}]
  %s2 = inlined_call_operand.vmem [shape: f32[1,256], index: 2, kind: input, shape index: {}]
  %s3 = inlined_call_operand.vmem [shape: bf16[256,128], index: 3, kind: input, shape index: {}]
  %s4 = inlined_call_operand.hbm [shape: f32[1,128], index: 4, kind: input, shape index: {}]
  %s5 = inlined_call_operand.vmem [shape: bf16[128,64], index: 5, kind: input, shape index: {}]
  %s6 = inlined_call_operand.hbm [shape: f32[1,64], index: 6, kind: input, shape index: {}]
  %s7 = inlined_call_operand.hbm [shape: bf16[64,128], index: 7, kind: input, shape index: {}]
  %s8 = inlined_call_operand.hbm [shape: f32[1,128], index: 8, kind: input, shape index: {}]
  %s9 = inlined_call_operand.hbm [shape: f32[8,128], index: 9, kind: output, shape index: {}]
  %s10 = sld [smem:[#allocation0]]
  $region66: #{maml_module1_forward.1} parent=0
    _
  %s12 = ssub.s32 1, %s10
  %s13 = scalar_select 0, %s12, %s10
  $region1: #{maml_module1_forward.1} parent=0
    #allocation2 [shape = 'u8[16384]{0}', space=vmem, size = 0x4000, scoped, tag = 'input window, operand 1, single buffered']
    #allocation3 [shape = 's32[1]{0}', space=sflag, size = 0x4, scoped, tag = 'scoped memory for maml_module1_forward.1']
    #allocation4 [shape = 's32[1]{0}', space=sflag, size = 0x4, scoped, tag = 'scoped memory for maml_module1_forward.1']
    #allocation5 [shape = 'u8[512]{0}', space=vmem, size = 0x400, scoped, tag = 'input window, operand 4, single buffered']
    #allocation6 [shape = 's32[1]{0}', space=sflag, size = 0x4, scoped, tag = 'scoped memory for maml_module1_forward.1']
    #allocation7 [shape = 'u8[512]{0}', space=vmem, size = 0x400, scoped, tag = 'input window, operand 6, single buffered']
    #allocation8 [shape = 'u8[16384]{0}', space=vmem, size = 0x4000, scoped, tag = 'input window, operand 7, single buffered']
    #allocation9 [shape = 's32[1]{0}', space=sflag, size = 0x4, scoped, tag = 'scoped memory for maml_module1_forward.1']
    #allocation10 [shape = 'u8[512]{0}', space=vmem, size = 0x400, scoped, tag = 'input window, operand 8, single buffered']
    #allocation11 [shape = 'u8[4096]{0}', space=vmem, size = 0x1000, scoped, tag = 'output window, operand 0, single buffered']
    %14 = vsyncpa [#allocation3], 0
    %15 = vsyncpa [#allocation6], 0
    %16 = vsyncpa [#allocation9], 0
    %17 = vsyncpa [#allocation4], 0
    // Predicated region
    $region2: #{maml_module1_forward.1} parent=1 // pred_check
      _
    $region3: #{maml_module1_forward.1} parent=1 // pred_check_branch
      %19 = sbr.rel (0) target = $region5
    $region4: #{maml_module1_forward.1} parent=1 // pred_region
      _
    $region5: #{maml_module1_forward.1} parent=1 // pred_fallthru
      _
    // Predicated region
    $region6: #{maml_module1_forward.1} parent=1 // pred_check
      _
    $region7: #{maml_module1_forward.1} parent=1 // pred_check_branch
      %21 = sbr.rel (0) target = $region9
    $region8: #{maml_module1_forward.1} parent=1 // pred_region
      %s23 = ssub.s32 512, 512
      %24 = vsyncadd [#allocation3], %s23
      %s25 = sshll.u32 [#allocation2], 4
      %s26 = int_to_ptr.vmem [resolvable:$true] %s25
      %31 = dma.hbm_to_vmem [thread:$0]  %s1, 512, %s26, [#allocation3], 128, 128, 8
    $region9: #{maml_module1_forward.1} parent=1 // pred_fallthru
      _
    // Predicated region
    $region10: #{maml_module1_forward.1} parent=1 // pred_check
      _
    $region11: #{maml_module1_forward.1} parent=1 // pred_check_branch
      %33 = sbr.rel (0) target = $region13
    $region12: #{maml_module1_forward.1} parent=1 // pred_region
      _
    $region13: #{maml_module1_forward.1} parent=1 // pred_fallthru
      _
    // Predicated region
    $region14: #{maml_module1_forward.1} parent=1 // pred_check
      _
    $region15: #{maml_module1_forward.1} parent=1 // pred_check_branch
      %35 = sbr.rel (0) target = $region17
    $region16: #{maml_module1_forward.1} parent=1 // pred_region
      _
    $region17: #{maml_module1_forward.1} parent=1 // pred_fallthru
      _
    // Predicated region
    $region18: #{maml_module1_forward.1} parent=1 // pred_check
      _
    $region19: #{maml_module1_forward.1} parent=1 // pred_check_branch
      %37 = sbr.rel (0) target = $region21
    $region20: #{maml_module1_forward.1} parent=1 // pred_region
      %s39 = ssub.s32 16, 16
      %40 = vsyncadd [#allocation6], %s39
      %s42 = sshll.u32 [#allocation5], 4
      %s43 = int_to_ptr.vmem [resolvable:$true] %s42
      %45 = dma.hbm_to_vmem [thread:$0]  %s4, 16, %s43, [#allocation6]
    $region21: #{maml_module1_forward.1} parent=1 // pred_fallthru
      _
    // Predicated region
    $region22: #{maml_module1_forward.1} parent=1 // pred_check
      _
    $region23: #{maml_module1_forward.1} parent=1 // pred_check_branch
      %47 = sbr.rel (0) target = $region25
    $region24: #{maml_module1_forward.1} parent=1 // pred_region
      _
    $region25: #{maml_module1_forward.1} parent=1 // pred_fallthru
      _
    // Predicated region
    $region26: #{maml_module1_forward.1} parent=1 // pred_check
      _
    $region27: #{maml_module1_forward.1} parent=1 // pred_check_branch
      %49 = sbr.rel (0) target = $region29
    $region28: #{maml_module1_forward.1} parent=1 // pred_region
      %s51 = ssub.s32 16, 16
      %52 = vsyncadd [#allocation6], %s51
      %s54 = sshll.u32 [#allocation7], 4
      %s55 = int_to_ptr.vmem [resolvable:$true] %s54
      %57 = dma.hbm_to_vmem [thread:$0]  %s6, 16, %s55, [#allocation6]
    $region29: #{maml_module1_forward.1} parent=1 // pred_fallthru
      _
    // Predicated region
    $region30: #{maml_module1_forward.1} parent=1 // pred_check
      _
    $region31: #{maml_module1_forward.1} parent=1 // pred_check_branch
      %59 = sbr.rel (0) target = $region33
    $region32: #{maml_module1_forward.1} parent=1 // pred_region
      %s61 = ssub.s32 512, 512
      %62 = vsyncadd [#allocation9], %s61
      %s63 = sshll.u32 [#allocation8], 4
      %s64 = int_to_ptr.vmem [resolvable:$true] %s63
      %69 = dma.hbm_to_vmem [thread:$0]  %s7, 512, %s64, [#allocation9], 64, 64, 4
    $region33: #{maml_module1_forward.1} parent=1 // pred_fallthru
      _
    // Predicated region
    $region34: #{maml_module1_forward.1} parent=1 // pred_check
      _
    $region35: #{maml_module1_forward.1} parent=1 // pred_check_branch
      %71 = sbr.rel (0) target = $region37
    $region36: #{maml_module1_forward.1} parent=1 // pred_region
      %s73 = ssub.s32 16, 16
      %74 = vsyncadd [#allocation9], %s73
      %s76 = sshll.u32 [#allocation10], 4
      %s77 = int_to_ptr.vmem [resolvable:$true] %s76
      %79 = dma.hbm_to_vmem [thread:$0]  %s8, 16, %s77, [#allocation9]
    $region37: #{maml_module1_forward.1} parent=1 // pred_fallthru
      _
    // Predicated region
    $region38: #{maml_module1_forward.1} parent=1 // pred_check
      _
    $region39: #{maml_module1_forward.1} parent=1 // pred_check_branch
      %81 = sbr.rel (0) target = $region41
    $region40: #{maml_module1_forward.1} parent=1 // pred_region
      %82 = dma.done [#allocation3], 512
    $region41: #{maml_module1_forward.1} parent=1 // pred_fallthru
      _
    // Predicated region
    $region42: #{maml_module1_forward.1} parent=1 // pred_check
      _
    $region43: #{maml_module1_forward.1} parent=1 // pred_check_branch
      %84 = sbr.rel (0) target = $region45
    $region44: #{maml_module1_forward.1} parent=1 // pred_region
      %85 = dma.done [#allocation6], 16
    $region45: #{maml_module1_forward.1} parent=1 // pred_fallthru
      _
    // Predicated region
    $region46: #{maml_module1_forward.1} parent=1 // pred_check
      _
    $region47: #{maml_module1_forward.1} parent=1 // pred_check_branch
      %87 = sbr.rel (0) target = $region49
    $region48: #{maml_module1_forward.1} parent=1 // pred_region
      %88 = dma.done [#allocation6], 16
    $region49: #{maml_module1_forward.1} parent=1 // pred_fallthru
      _
    // Predicated region
    $region50: #{maml_module1_forward.1} parent=1 // pred_check
      _
    $region51: #{maml_module1_forward.1} parent=1 // pred_check_branch
      %90 = sbr.rel (0) target = $region53
    $region52: #{maml_module1_forward.1} parent=1 // pred_region
      %91 = dma.done [#allocation9], 512
    $region53: #{maml_module1_forward.1} parent=1 // pred_fallthru
      _
    // Predicated region
    $region54: #{maml_module1_forward.1} parent=1 // pred_check
      _
    $region55: #{maml_module1_forward.1} parent=1 // pred_check_branch
      %93 = sbr.rel (0) target = $region57
    $region56: #{maml_module1_forward.1} parent=1 // pred_region
      %94 = dma.done [#allocation9], 16
    $region57: #{maml_module1_forward.1} parent=1 // pred_fallthru
      _
    %v96 = vld [vmem:[%s0] sm:$0xf]
    %v97 = vld [vmem:[#allocation2] sm:$0xff]
    %v98 = vld [vmem:[#allocation2 + $0x8] sm:$0xff]
    %v99 = vld [vmem:[#allocation2 + $0x10] sm:$0xff]
    %v100 = vld [vmem:[#allocation2 + $0x18] sm:$0xff]
    %v101 = vld [vmem:[%s2] sm:$0x3]
    %v103 = vlaneseq
    %v104 = vshrl.u32 %v103, 7
    %v105 = vsub.s32 0, %v104
    %v106 = vrot.slane %v101, %v105
    %v107 = vlaneseq
    %v108 = vshrl.u32 %v107, 7
    %v109 = vsub.s32 1, %v108
    %v110 = vrot.slane %v101, %v109
    %v117 = vunpack.c.l.b16 %v97
    %v118 = vunpack.c.h.b16 %v97
    %v119 = vunpack.c.l.b16 %v98
    %v120 = vunpack.c.h.b16 %v98
    %v121 = vunpack.c.l.b16 %v99
    %v122 = vunpack.c.h.b16 %v99
    %v123 = vunpack.c.l.b16 %v100
    %v124 = vunpack.c.h.b16 %v100
    %v125 = vpack.c.b16 %v119, %v117
    %v126 = vpack.c.b16 %v120, %v118
    %v127 = vpack.c.b16 %v123, %v121
    %v128 = vpack.c.b16 %v124, %v122
    %vm133 = vcmask 261120
    %v135 = vsel %vm133, %v96, 0
    %137 = vmatprep.subr.bf16.mxu0 %v126
    %138 = vmatpush1.bf16.msra.mxu0 %v125
    %139 = vmatprep.subr.bf16.mxu0 %v128
    %140 = vmatpush1.bf16.msra.mxu0 %v127
    %141 = vmatprep.subr.bf16.mxu0 0
    %142 = vmatpush1.bf16.msra.mxu0 0
    %143 = vmatprep.subr.bf16.mxu0 0
    %144 = vmatpush1.bf16.msra.mxu0 0
    %145 = vmatprep.subr.bf16.mxu0 0
    %146 = vmatpush1.bf16.msra.mxu0 0
    %147 = vmatprep.subr.bf16.mxu0 0
    %148 = vmatpush1.bf16.msra.mxu0 0
    %149 = vmatprep.subr.bf16.mxu0 0
    %150 = vmatpush1.bf16.msra.mxu0 0
    %151 = vmatprep.subr.bf16.mxu0 0
    %152 = vmatpush1.bf16.msra.mxu0 0
    %153 = vmatprep.subr.bf16.mxu0 0
    %154 = vmatpush1.bf16.msra.mxu0 0
    %155 = vmatprep.subr.bf16.mxu0 0
    %156 = vmatpush1.bf16.msra.mxu0 0
    %157 = vmatprep.subr.bf16.mxu0 0
    %158 = vmatpush1.bf16.msra.mxu0 0
    %159 = vmatprep.subr.bf16.mxu0 0
    %160 = vmatpush1.bf16.msra.mxu0 0
    %161 = vmatprep.subr.bf16.mxu0 0
    %162 = vmatpush1.bf16.msra.mxu0 0
    %163 = vmatprep.subr.bf16.mxu0 0
    %164 = vmatpush1.bf16.msra.mxu0 0
    %165 = vmatprep.subr.bf16.mxu0 0
    %166 = vmatpush1.bf16.msra.mxu0 0
    %167 = vmatprep.subr.bf16.mxu0 0
    %168 = vmatpush1.bf16.msra.mxu0 0
    %169 = vmatprep.mubr.bf16.mxu0 0
    %170 = vmatmul.mubr.bf16.gmra.mrb[0].mxu0 %v135
    %v171 = vpop.f32.mrb[0].mxu0
    %v172 = vadd.f32 %v106, %v171
    %v173 = vpop.f32.mrb[0].mxu0
    %v174 = vadd.f32 %v110, %v173
    %v175 = vpop.f32.mrb[0].mxu0
    %v176 = vpop.f32.mrb[0].mxu0
    %177 = vdwg.mxu0
    %v178 = vmax.f32 %v172, 0.0
    %v179 = vmax.f32 %v174, 0.0
    %v180 = vpack.c.bf16 %v178, %v178
    %v181 = vpack.c.bf16 %v179, %v179
    %v182 = vld [vmem:[%s3] sm:$0xf]
    %v183 = vld [vmem:[%s3 + $0x4] sm:$0xf]
    %v184 = vld [vmem:[%s3 + $0x8] sm:$0xf]
    %v185 = vld [vmem:[%s3 + $0xc] sm:$0xf]
    %v186 = vld [vmem:[%s3 + $0x10] sm:$0xf]
    %v187 = vld [vmem:[%s3 + $0x14] sm:$0xf]
    %v188 = vld [vmem:[%s3 + $0x18] sm:$0xf]
    %v189 = vld [vmem:[%s3 + $0x1c] sm:$0xf]
    %v190 = vld [vmem:[%s3 + $0x20] sm:$0xf]
    %v191 = vld [vmem:[%s3 + $0x24] sm:$0xf]
    %v192 = vld [vmem:[%s3 + $0x28] sm:$0xf]
    %v193 = vld [vmem:[%s3 + $0x2c] sm:$0xf]
    %v194 = vld [vmem:[%s3 + $0x30] sm:$0xf]
    %v195 = vld [vmem:[%s3 + $0x34] sm:$0xf]
    %v196 = vld [vmem:[%s3 + $0x38] sm:$0xf]
    %v197 = vld [vmem:[%s3 + $0x3c] sm:$0xf]
    %v198 = vld [vmem:[%s3 + $0x40] sm:$0xf]
    %v199 = vld [vmem:[%s3 + $0x44] sm:$0xf]
    %v200 = vld [vmem:[%s3 + $0x48] sm:$0xf]
    %v201 = vld [vmem:[%s3 + $0x4c] sm:$0xf]
    %v202 = vld [vmem:[%s3 + $0x50] sm:$0xf]
    %v203 = vld [vmem:[%s3 + $0x54] sm:$0xf]
    %v204 = vld [vmem:[%s3 + $0x58] sm:$0xf]
    %v205 = vld [vmem:[%s3 + $0x5c] sm:$0xf]
    %v206 = vld [vmem:[%s3 + $0x60] sm:$0xf]
    %v207 = vld [vmem:[%s3 + $0x64] sm:$0xf]
    %v208 = vld [vmem:[%s3 + $0x68] sm:$0xf]
    %v209 = vld [vmem:[%s3 + $0x6c] sm:$0xf]
    %v210 = vld [vmem:[%s3 + $0x70] sm:$0xf]
    %v211 = vld [vmem:[%s3 + $0x74] sm:$0xf]
    %v212 = vld [vmem:[%s3 + $0x78] sm:$0xf]
    %v213 = vld [vmem:[%s3 + $0x7c] sm:$0xf]
    %v214 = vld [vmem:[#allocation5] sm:$0x1]
    %v216 = vlaneseq
    %v217 = vshrl.u32 %v216, 7
    %v218 = vsub.s32 0, %v217
    %v219 = vrot.slane %v214, %v218
    %v253 = vunpack.c.l.b16 %v182
    %v254 = vunpack.c.l.b16 %v183
    %v255 = vunpack.c.l.b16 %v184
    %v256 = vunpack.c.l.b16 %v185
    %v257 = vunpack.c.l.b16 %v186
    %v258 = vunpack.c.l.b16 %v187
    %v259 = vunpack.c.l.b16 %v188
    %v260 = vunpack.c.l.b16 %v189
    %v261 = vunpack.c.l.b16 %v190
    %v262 = vunpack.c.l.b16 %v191
    %v263 = vunpack.c.l.b16 %v192
    %v264 = vunpack.c.l.b16 %v193
    %v265 = vunpack.c.l.b16 %v194
    %v266 = vunpack.c.l.b16 %v195
    %v267 = vunpack.c.l.b16 %v196
    %v268 = vunpack.c.l.b16 %v197
    %v269 = vunpack.c.l.b16 %v198
    %v270 = vunpack.c.l.b16 %v199
    %v271 = vunpack.c.l.b16 %v200
    %v272 = vunpack.c.l.b16 %v201
    %v273 = vunpack.c.l.b16 %v202
    %v274 = vunpack.c.l.b16 %v203
    %v275 = vunpack.c.l.b16 %v204
    %v276 = vunpack.c.l.b16 %v205
    %v277 = vunpack.c.l.b16 %v206
    %v278 = vunpack.c.l.b16 %v207
    %v279 = vunpack.c.l.b16 %v208
    %v280 = vunpack.c.l.b16 %v209
    %v281 = vunpack.c.l.b16 %v210
    %v282 = vunpack.c.l.b16 %v211
    %v283 = vunpack.c.l.b16 %v212
    %v284 = vunpack.c.l.b16 %v213
    %v285 = vpack.c.b16 %v254, %v253
    %v286 = vpack.c.b16 %v256, %v255
    %v287 = vpack.c.b16 %v258, %v257
    %v288 = vpack.c.b16 %v260, %v259
    %v289 = vpack.c.b16 %v262, %v261
    %v290 = vpack.c.b16 %v264, %v263
    %v291 = vpack.c.b16 %v266, %v265
    %v292 = vpack.c.b16 %v268, %v267
    %v293 = vpack.c.b16 %v270, %v269
    %v294 = vpack.c.b16 %v272, %v271
    %v295 = vpack.c.b16 %v274, %v273
    %v296 = vpack.c.b16 %v276, %v275
    %v297 = vpack.c.b16 %v278, %v277
    %v298 = vpack.c.b16 %v280, %v279
    %v299 = vpack.c.b16 %v282, %v281
    %v300 = vpack.c.b16 %v284, %v283
    %317 = vmatprep.subr.bf16.mxu0 0
    %318 = vmatpush1.bf16.msra.mxu0 %v285
    %319 = vmatprep.subr.bf16.mxu0 0
    %320 = vmatpush1.bf16.msra.mxu0 %v286
    %321 = vmatprep.subr.bf16.mxu0 0
    %322 = vmatpush1.bf16.msra.mxu0 %v287
    %323 = vmatprep.subr.bf16.mxu0 0
    %324 = vmatpush1.bf16.msra.mxu0 %v288
    %325 = vmatprep.subr.bf16.mxu0 0
    %326 = vmatpush1.bf16.msra.mxu0 %v289
    %327 = vmatprep.subr.bf16.mxu0 0
    %328 = vmatpush1.bf16.msra.mxu0 %v290
    %329 = vmatprep.subr.bf16.mxu0 0
    %330 = vmatpush1.bf16.msra.mxu0 %v291
    %331 = vmatprep.subr.bf16.mxu0 0
    %332 = vmatpush1.bf16.msra.mxu0 %v292
    %333 = vmatprep.subr.bf16.mxu0 0
    %334 = vmatpush1.bf16.msra.mxu0 %v293
    %335 = vmatprep.subr.bf16.mxu0 0
    %336 = vmatpush1.bf16.msra.mxu0 %v294
    %337 = vmatprep.subr.bf16.mxu0 0
    %338 = vmatpush1.bf16.msra.mxu0 %v295
    %339 = vmatprep.subr.bf16.mxu0 0
    %340 = vmatpush1.bf16.msra.mxu0 %v296
    %341 = vmatprep.subr.bf16.mxu0 0
    %342 = vmatpush1.bf16.msra.mxu0 %v297
    %343 = vmatprep.subr.bf16.mxu0 0
    %344 = vmatpush1.bf16.msra.mxu0 %v298
    %345 = vmatprep.subr.bf16.mxu0 0
    %346 = vmatpush1.bf16.msra.mxu0 %v299
    %347 = vmatprep.subr.bf16.mxu0 0
    %348 = vmatpush1.bf16.msra.mxu0 %v300
    %349 = vmatprep.mubr.bf16.mxu0 %v181
    %350 = vmatmul.mubr.bf16.gmra.mrb[0].mxu0 %v180
    %v351 = vpop.f32.mrb[0].mxu0
    %v352 = vadd.f32 %v219, %v351
    %v353 = vpop.f32.mrb[0].mxu0
    %v354 = vpop.f32.mrb[0].mxu0
    %v355 = vpop.f32.mrb[0].mxu0
    %356 = vdwg.mxu0
    %v357 = vmax.f32 %v352, 0.0
    %v358 = vpack.c.bf16 %v357, %v357
    %v359 = vld [vmem:[%s5] sm:$0xf]
    %v360 = vld [vmem:[%s5 + $0x4] sm:$0xf]
    %v361 = vld [vmem:[%s5 + $0x8] sm:$0xf]
    %v362 = vld [vmem:[%s5 + $0xc] sm:$0xf]
    %v363 = vld [vmem:[%s5 + $0x10] sm:$0xf]
    %v364 = vld [vmem:[%s5 + $0x14] sm:$0xf]
    %v365 = vld [vmem:[%s5 + $0x18] sm:$0xf]
    %v366 = vld [vmem:[%s5 + $0x1c] sm:$0xf]
    %v367 = vld [vmem:[%s5 + $0x20] sm:$0xf]
    %v368 = vld [vmem:[%s5 + $0x24] sm:$0xf]
    %v369 = vld [vmem:[%s5 + $0x28] sm:$0xf]
    %v370 = vld [vmem:[%s5 + $0x2c] sm:$0xf]
    %v371 = vld [vmem:[%s5 + $0x30] sm:$0xf]
    %v372 = vld [vmem:[%s5 + $0x34] sm:$0xf]
    %v373 = vld [vmem:[%s5 + $0x38] sm:$0xf]
    %v374 = vld [vmem:[%s5 + $0x3c] sm:$0xf]
    %v375 = vld [vmem:[#allocation7] sm:$0x1]
    %v377 = vlaneseq
    %v378 = vshrl.u32 %v377, 7
    %v379 = vsub.s32 0, %v378
    %v380 = vrot.slane %v375, %v379
    %v398 = vunpack.c.l.b16 %v359
    %v399 = vunpack.c.l.b16 %v360
    %v400 = vunpack.c.l.b16 %v361
    %v401 = vunpack.c.l.b16 %v362
    %v402 = vunpack.c.l.b16 %v363
    %v403 = vunpack.c.l.b16 %v364
    %v404 = vunpack.c.l.b16 %v365
    %v405 = vunpack.c.l.b16 %v366
    %v406 = vunpack.c.l.b16 %v367
    %v407 = vunpack.c.l.b16 %v368
    %v408 = vunpack.c.l.b16 %v369
    %v409 = vunpack.c.l.b16 %v370
    %v410 = vunpack.c.l.b16 %v371
    %v411 = vunpack.c.l.b16 %v372
    %v412 = vunpack.c.l.b16 %v373
    %v413 = vunpack.c.l.b16 %v374
    %v414 = vpack.c.b16 %v399, %v398
    %v415 = vpack.c.b16 %v401, %v400
    %v416 = vpack.c.b16 %v403, %v402
    %v417 = vpack.c.b16 %v405, %v404
    %v418 = vpack.c.b16 %v407, %v406
    %v419 = vpack.c.b16 %v409, %v408
    %v420 = vpack.c.b16 %v411, %v410
    %v421 = vpack.c.b16 %v413, %v412
    %430 = vmatprep.subr.bf16.mxu0 0
    %431 = vmatpush1.bf16.msra.mxu0 %v414
    %432 = vmatprep.subr.bf16.mxu0 0
    %433 = vmatpush1.bf16.msra.mxu0 %v415
    %434 = vmatprep.subr.bf16.mxu0 0
    %435 = vmatpush1.bf16.msra.mxu0 %v416
    %436 = vmatprep.subr.bf16.mxu0 0
    %437 = vmatpush1.bf16.msra.mxu0 %v417
    %438 = vmatprep.subr.bf16.mxu0 0
    %439 = vmatpush1.bf16.msra.mxu0 %v418
    %440 = vmatprep.subr.bf16.mxu0 0
    %441 = vmatpush1.bf16.msra.mxu0 %v419
    %442 = vmatprep.subr.bf16.mxu0 0
    %443 = vmatpush1.bf16.msra.mxu0 %v420
    %444 = vmatprep.subr.bf16.mxu0 0
    %445 = vmatpush1.bf16.msra.mxu0 %v421
    %446 = vmatprep.subr.bf16.mxu0 0
    %447 = vmatpush1.bf16.msra.mxu0 0
    %448 = vmatprep.subr.bf16.mxu0 0
    %449 = vmatpush1.bf16.msra.mxu0 0
    %450 = vmatprep.subr.bf16.mxu0 0
    %451 = vmatpush1.bf16.msra.mxu0 0
    %452 = vmatprep.subr.bf16.mxu0 0
    %453 = vmatpush1.bf16.msra.mxu0 0
    %454 = vmatprep.subr.bf16.mxu0 0
    %455 = vmatpush1.bf16.msra.mxu0 0
    %456 = vmatprep.subr.bf16.mxu0 0
    %457 = vmatpush1.bf16.msra.mxu0 0
    %458 = vmatprep.subr.bf16.mxu0 0
    %459 = vmatpush1.bf16.msra.mxu0 0
    %460 = vmatprep.subr.bf16.mxu0 0
    %461 = vmatpush1.bf16.msra.mxu0 0
    %462 = vmatprep.mubr.bf16.mxu0 0
    %463 = vmatmul.mubr.bf16.gmra.mrb[0].mxu0 %v358
    %v464 = vpop.f32.mrb[0].mxu0
    %v465 = vadd.f32 %v380, %v464
    %v466 = vpop.f32.mrb[0].mxu0
    %v467 = vpop.f32.mrb[0].mxu0
    %v468 = vpop.f32.mrb[0].mxu0
    %469 = vdwg.mxu0
    %v470 = vmax.f32 %v465, 0.0
    %v471 = vpack.c.bf16 %v470, %v470
    %v472 = vld [vmem:[#allocation8] sm:$0xf]
    %v473 = vld [vmem:[#allocation8 + $0x4] sm:$0xf]
    %v474 = vld [vmem:[#allocation8 + $0x8] sm:$0xf]
    %v475 = vld [vmem:[#allocation8 + $0xc] sm:$0xf]
    %v476 = vld [vmem:[#allocation8 + $0x10] sm:$0xf]
    %v477 = vld [vmem:[#allocation8 + $0x14] sm:$0xf]
    %v478 = vld [vmem:[#allocation8 + $0x18] sm:$0xf]
    %v479 = vld [vmem:[#allocation8 + $0x1c] sm:$0xf]
    %v480 = vld [vmem:[#allocation10] sm:$0x1]
    %v482 = vlaneseq
    %v483 = vshrl.u32 %v482, 7
    %v484 = vsub.s32 0, %v483
    %v485 = vrot.slane %v480, %v484
    %v495 = vunpack.c.l.b16 %v472
    %v496 = vunpack.c.l.b16 %v473
    %v497 = vunpack.c.l.b16 %v474
    %v498 = vunpack.c.l.b16 %v475
    %v499 = vunpack.c.l.b16 %v476
    %v500 = vunpack.c.l.b16 %v477
    %v501 = vunpack.c.l.b16 %v478
    %v502 = vunpack.c.l.b16 %v479
    %v503 = vpack.c.b16 %v496, %v495
    %v504 = vpack.c.b16 %v498, %v497
    %v505 = vpack.c.b16 %v500, %v499
    %v506 = vpack.c.b16 %v502, %v501
    %vm511 = vcmask 523264
    %v513 = vsel %vm511, %v471, 0
    %515 = vmatprep.subr.bf16.mxu0 0
    %516 = vmatpush1.bf16.msra.mxu0 %v503
    %517 = vmatprep.subr.bf16.mxu0 0
    %518 = vmatpush1.bf16.msra.mxu0 %v504
    %519 = vmatprep.subr.bf16.mxu0 0
    %520 = vmatpush1.bf16.msra.mxu0 %v505
    %521 = vmatprep.subr.bf16.mxu0 0
    %522 = vmatpush1.bf16.msra.mxu0 %v506
    %523 = vmatprep.subr.bf16.mxu0 0
    %524 = vmatpush1.bf16.msra.mxu0 0
    %525 = vmatprep.subr.bf16.mxu0 0
    %526 = vmatpush1.bf16.msra.mxu0 0
    %527 = vmatprep.subr.bf16.mxu0 0
    %528 = vmatpush1.bf16.msra.mxu0 0
    %529 = vmatprep.subr.bf16.mxu0 0
    %530 = vmatpush1.bf16.msra.mxu0 0
    %531 = vmatprep.subr.bf16.mxu0 0
    %532 = vmatpush1.bf16.msra.mxu0 0
    %533 = vmatprep.subr.bf16.mxu0 0
    %534 = vmatpush1.bf16.msra.mxu0 0
    %535 = vmatprep.subr.bf16.mxu0 0
    %536 = vmatpush1.bf16.msra.mxu0 0
    %537 = vmatprep.subr.bf16.mxu0 0
    %538 = vmatpush1.bf16.msra.mxu0 0
    %539 = vmatprep.subr.bf16.mxu0 0
    %540 = vmatpush1.bf16.msra.mxu0 0
    %541 = vmatprep.subr.bf16.mxu0 0
    %542 = vmatpush1.bf16.msra.mxu0 0
    %543 = vmatprep.subr.bf16.mxu0 0
    %544 = vmatpush1.bf16.msra.mxu0 0
    %545 = vmatprep.subr.bf16.mxu0 0
    %546 = vmatpush1.bf16.msra.mxu0 0
    %547 = vmatprep.mubr.bf16.mxu0 0
    %548 = vmatmul.mubr.bf16.gmra.mrb[0].mxu0 %v513
    %v549 = vpop.f32.mrb[0].mxu0
    %v550 = vadd.f32 %v485, %v549
    %v551 = vpop.f32.mrb[0].mxu0
    %v552 = vpop.f32.mrb[0].mxu0
    %v553 = vpop.f32.mrb[0].mxu0
    %554 = vdwg.mxu0
    %555 = vmax.xlane.f32.xlu0 %v550
    %v556 = vpop.xlane.xlu0 %555
    %v557 = vsub.f32 %v550, %v556
    %v558 = vmul.f32 %v557, 1.442695
    %v559 = vpow.pop %v558
    %560 = vadd.xlane.f32.xlu0 %v559
    %v561 = vpop.xlane.xlu0 %560
    %v562 = vrcp.pop %v561
    %v563 = vmul.f32 %v559, %v562
    %564 = vst [vmem:[#allocation11] sm:$0xff] %v563
    // Predicated region
    $region58: #{maml_module1_forward.1} parent=1 // pred_check
      _
    $region59: #{maml_module1_forward.1} parent=1 // pred_check_branch
      %566 = sbr.rel (0) target = $region61
    $region60: #{maml_module1_forward.1} parent=1 // pred_region
      %s568 = ssub.s32 128, 128
      %569 = vsyncadd [#allocation4], %s568
      %s571 = sshll.u32 [#allocation11], 4
      %s572 = int_to_ptr.vmem [resolvable:$true] %s571
      %574 = dma.vmem_to_hbm [thread:$0]  %s572, 128, %s9, [#allocation4]
    $region61: #{maml_module1_forward.1} parent=1 // pred_fallthru
      _
    // Predicated region
    $region62: #{maml_module1_forward.1} parent=1 // pred_check
      _
    $region63: #{maml_module1_forward.1} parent=1 // pred_check_branch
      %576 = sbr.rel (0) target = $region65
    $region64: #{maml_module1_forward.1} parent=1 // pred_region
      %577 = dma.done [#allocation4], 128
    $region65: #{maml_module1_forward.1} parent=1 // pred_fallthru
      _
    %578 = vsyncpa [#allocation3], 1
    %579 = vsyncpa [#allocation6], 1
    %580 = vsyncpa [#allocation9], 1
    %581 = vsyncpa [#allocation4], 1

</llo_original>
